<compile_context>
chip_gen: v7x
topology: tpu7x:2x2x1
jax: 0.10.0
libtpu: 0.0.40
codegen_flags: <defaults>
</compile_context>

<pallas_src>
import functools

import jax
import jax.numpy as jnp
from jax.experimental import pallas as pl
from jax.experimental.pallas import tpu as pltpu

EPS = 1e-5


def residual_block_kernel(x_ref, w1_ref, w2_ref, g1_ref, be1_ref,
                          g2_ref, be2_ref, gmat_ref, o_ref, *, H, C):
    NH, WC = x_ref.shape                       # (N*H, W*C)
    inv_F = 1.0 / float(NH * (WC // C))        # 1 / (N*H*W)

    # Rows are ordered (n, y); a sublane roll wraps across image boundaries,
    # so zero those rows -> exactly zero-padding along H.
    row = jax.lax.broadcasted_iota(jnp.int32, (NH, WC), 0)
    not_top = (row % H) != 0                   # row y-1 exists
    not_bot = (row % H) != (H - 1)             # row y+1 exists

    gmat = gmat_ref[...]                       # (WC, WC) channel-sum/broadcast

    def conv3x3(a, wb_ref):
        # ky shifts on the XLU (free slot) + masks; kx shifts and the Cin
        # contraction are inside the block-banded weight -> one MXU matmul.
        a_up = jnp.where(not_top, pltpu.roll(a, 1, axis=0), 0.0)       # y-1
        a_dn = jnp.where(not_bot, pltpu.roll(a, NH - 1, axis=0), 0.0)  # y+1
        patch = jnp.concatenate([a_up, a, a_dn], axis=1)               # (NH, 3*WC)
        return jnp.dot(patch, wb_ref[...], preferred_element_type=jnp.float32)

    def batchnorm(y, g_row, be_row):
        # Training-mode BN, single pass over y: per-channel E[y], E[y^2].
        # dot(., gmat) sums the W lane-groups per channel and broadcasts the
        # result back across all lanes (no reshapes, stays lane-dense).
        ch_s = jnp.sum(jnp.dot(y, gmat, preferred_element_type=jnp.float32),
                       axis=0, keepdims=True)
        ch_q = jnp.sum(jnp.dot(y * y, gmat, preferred_element_type=jnp.float32),
                       axis=0, keepdims=True)
        mean = ch_s * inv_F
        var = ch_q * inv_F - mean * mean       # biased variance (PyTorch BN)
        inv = jax.lax.rsqrt(var + EPS)
        return (y - mean) * (inv * g_row) + be_row

    x = x_ref[...].astype(jnp.float32)

    # conv1 -> BN1 -> ReLU   (conv bias omitted: cancels under training BN)
    h = jnp.maximum(batchnorm(conv3x3(x, w1_ref), g1_ref[...], be1_ref[...]), 0.0)
    # conv2 -> BN2
    h2 = batchnorm(conv3x3(h, w2_ref), g2_ref[...], be2_ref[...])
    # residual add + ReLU, full-width unmasked store
    o_ref[...] = jnp.maximum(h2 + x, 0.0).astype(o_ref.dtype)


def _banded_weight(w_oihw, Wdim, C):
    """OIHW (Cout, Cin, 3, 3) -> (3*W*C, W*C) block-banded matrix.

    Row block ky, entry [x_in*C + ci, x_out*C + co] = w[ky, kx, ci, co] with
    kx = x_in - x_out + 1; entries outside the 3-wide band are zero, which
    reproduces padding=1 along W.
    """
    w = jnp.transpose(w_oihw, (2, 3, 1, 0))            # (3, 3, Cin, Cout) HWIO
    xi = jnp.arange(Wdim)[:, None]
    xo = jnp.arange(Wdim)[None, :]
    kx = xi - xo + 1                                   # (W, W)
    valid = (kx >= 0) & (kx <= 2)
    band = w[:, jnp.clip(kx, 0, 2)]                    # (3, W_in, W_out, Ci, Co)
    band = jnp.where(valid[None, :, :, None, None], band, 0.0)
    band = band.transpose(0, 1, 3, 2, 4)               # (3, W_in, Ci, W_out, Co)
    return band.reshape(3 * Wdim * C, Wdim * C)


def residual_block_pallas(x_nchw, params):
    """x_nchw: (N, C, H, W) float32. Returns (N, C, H, W). Training-mode BN."""
    x = jnp.transpose(x_nchw, (0, 2, 3, 1))            # NHWC (C on lanes)
    N, H, W, C = x.shape
    NH, WC = N * H, W * C
    x_slab = x.reshape(NH, WC)                         # lane-dense slab

    w1 = _banded_weight(params["w1"], W, C)            # (3*WC, WC)
    w2 = _banded_weight(params["w2"], W, C)
    gmat = jnp.tile(jnp.eye(C, dtype=jnp.float32), (W, W))   # (WC, WC)

    def row(v):                                        # (C,) -> (1, W*C)
        return jnp.tile(v, W).reshape(1, WC)

    args = (x_slab, w1, w2,
            row(params["g1"]), row(params["be1"]),
            row(params["g2"]), row(params["be2"]),
            gmat)

    out_slab = pl.pallas_call(
        functools.partial(residual_block_kernel, H=H, C=C),
        out_shape=jax.ShapeDtypeStruct((NH, WC), x.dtype),
        in_specs=[pl.BlockSpec(memory_space=pltpu.MemorySpace.VMEM)] * len(args),
        out_specs=pl.BlockSpec(memory_space=pltpu.MemorySpace.VMEM),
    )(*args)
    return jnp.transpose(out_slab.reshape(N, H, W, C), (0, 3, 1, 2))   # NCHW


# ---------- pure-JAX reference (correctness check only; keeps conv biases) ----------
def residual_block_reference(x, p):
    dn = jax.lax.conv_dimension_numbers(x.shape, p["w1"].shape,
                                        ("NCHW", "OIHW", "NCHW"))

    def conv(y, w, b):
        y = jax.lax.conv_general_dilated(y, w, (1, 1), ((1, 1), (1, 1)),
                                         dimension_numbers=dn)
        return y + b[None, :, None, None]

    def bn(y, g, be):
        mean = jnp.mean(y, axis=(0, 2, 3), keepdims=True)
        var = jnp.mean((y - mean) ** 2, axis=(0, 2, 3), keepdims=True)
        return ((y - mean) * jax.lax.rsqrt(var + EPS)
                * g[None, :, None, None] + be[None, :, None, None])

    h = jax.nn.relu(bn(conv(x, p["w1"], p["b1"]), p["g1"], p["be1"]))
    h2 = bn(conv(h, p["w2"], p["b2"]), p["g2"], p["be2"])
    return jax.nn.relu(h2 + x)


if __name__ == "__main__":
    N, C, H, W = 2, 8, 16, 16                  # W*C = 128 -> fully lane-dense
    key = jax.random.PRNGKey(0)
    kx_, k1, k2, kb1, kb2 = jax.random.split(key, 5)

    bound = 1.0 / (C * 9) ** 0.5               # kaiming-uniform-like scale
    params = {
        "w1": jax.random.uniform(k1, (C, C, 3, 3), jnp.float32, -bound, bound),
        "b1": jax.random.uniform(kb1, (C,), jnp.float32, -bound, bound),
        "g1": jnp.ones((C,), jnp.float32),     # BatchNorm2d defaults
        "be1": jnp.zeros((C,), jnp.float32),
        "w2": jax.random.uniform(k2, (C, C, 3, 3), jnp.float32, -bound, bound),
        "b2": jax.random.uniform(kb2, (C,), jnp.float32, -bound, bound),
        "g2": jnp.ones((C,), jnp.float32),
        "be2": jnp.zeros((C,), jnp.float32),
    }
    x = jax.random.normal(kx_, (N, C, H, W), jnp.float32)

    out = jax.block_until_ready(residual_block_pallas(x, params))
    ref = jax.block_until_ready(residual_block_reference(x, params))

    assert out.shape == (N, C, H, W)
    err = float(jnp.max(jnp.abs(out - ref)))
    assert jnp.allclose(out, ref, rtol=1e-3, atol=1e-3), (
        f"mismatch vs reference: max abs err = {err}")
    print("KERNEL_OK")
</pallas_src>

<mosaic_0001>
module attributes {stable_mosaic.version = 11 : i64} {
  func.func @residual_block_kernel(%arg0: memref<32x128xf32, #tpu.memory_space<vmem>>, %arg1: memref<384x128xf32, #tpu.memory_space<vmem>>, %arg2: memref<384x128xf32, #tpu.memory_space<vmem>>, %arg3: memref<1x128xf32, #tpu.memory_space<vmem>>, %arg4: memref<1x128xf32, #tpu.memory_space<vmem>>, %arg5: memref<1x128xf32, #tpu.memory_space<vmem>>, %arg6: memref<1x128xf32, #tpu.memory_space<vmem>>, %arg7: memref<128x128xf32, #tpu.memory_space<vmem>>, %arg8: memref<32x128xf32, #tpu.memory_space<vmem>>) attributes {dimension_semantics = [], scalar_prefetch = 0 : i64, scratch_operands = 0 : i64, tpu.core_type = #tpu.core_type<tc>} {
    %0 = tpu.iota {dimensions = array<i32: 0>} : vector<32x128xi32>
    %c16_i32 = arith.constant 16 : i32
    %c0_i32 = arith.constant 0 : i32
    %1 = arith.cmpi eq, %c16_i32, %c0_i32 : i32
    %c1_i32 = arith.constant 1 : i32
    %2 = arith.select %1, %c1_i32, %c16_i32 : i32
    %3 = vector.broadcast %2 : i32 to vector<32x128xi32>
    %4 = arith.remsi %0, %3 : vector<32x128xi32>
    %c0_i32_0 = arith.constant 0 : i32
    %5 = vector.broadcast %c0_i32_0 : i32 to vector<32x128xi32>
    %6 = arith.cmpi ne, %4, %5 : vector<32x128xi32>
    %c0_i32_1 = arith.constant 0 : i32
    %7 = vector.broadcast %c0_i32_1 : i32 to vector<32x128xi32>
    %8 = arith.cmpi slt, %4, %7 : vector<32x128xi32>
    %c0_i32_2 = arith.constant 0 : i32
    %9 = arith.cmpi slt, %2, %c0_i32_2 : i32
    %10 = vector.broadcast %9 : i1 to vector<32x128xi1>
    %11 = vector.broadcast %10 : vector<32x128xi1> to vector<32x128xi1>
    %12 = arith.xori %8, %11 : vector<32x128xi1>
    %13 = arith.andi %12, %6 : vector<32x128xi1>
    %14 = vector.broadcast %2 : i32 to vector<32x128xi32>
    %15 = arith.addi %4, %14 : vector<32x128xi32>
    %16 = arith.select %13, %15, %4 : vector<32x128xi1>, vector<32x128xi32>
    %c0_i32_3 = arith.constant 0 : i32
    %17 = vector.broadcast %c0_i32_3 : i32 to vector<32x128xi32>
    %18 = arith.cmpi ne, %16, %17 : vector<32x128xi32>
    %c16_i32_4 = arith.constant 16 : i32
    %c0_i32_5 = arith.constant 0 : i32
    %19 = arith.cmpi eq, %c16_i32_4, %c0_i32_5 : i32
    %c1_i32_6 = arith.constant 1 : i32
    %20 = arith.select %19, %c1_i32_6, %c16_i32_4 : i32
    %21 = vector.broadcast %20 : i32 to vector<32x128xi32>
    %22 = arith.remsi %0, %21 : vector<32x128xi32>
    %c0_i32_7 = arith.constant 0 : i32
    %23 = vector.broadcast %c0_i32_7 : i32 to vector<32x128xi32>
    %24 = arith.cmpi ne, %22, %23 : vector<32x128xi32>
    %c0_i32_8 = arith.constant 0 : i32
    %25 = vector.broadcast %c0_i32_8 : i32 to vector<32x128xi32>
    %26 = arith.cmpi slt, %22, %25 : vector<32x128xi32>
    %c0_i32_9 = arith.constant 0 : i32
    %27 = arith.cmpi slt, %20, %c0_i32_9 : i32
    %28 = vector.broadcast %27 : i1 to vector<32x128xi1>
    %29 = vector.broadcast %28 : vector<32x128xi1> to vector<32x128xi1>
    %30 = arith.xori %26, %29 : vector<32x128xi1>
    %31 = arith.andi %30, %24 : vector<32x128xi1>
    %32 = vector.broadcast %20 : i32 to vector<32x128xi32>
    %33 = arith.addi %22, %32 : vector<32x128xi32>
    %34 = arith.select %31, %33, %22 : vector<32x128xi1>, vector<32x128xi32>
    %c15_i32 = arith.constant 15 : i32
    %35 = vector.broadcast %c15_i32 : i32 to vector<32x128xi32>
    %36 = arith.cmpi ne, %34, %35 : vector<32x128xi32>
    %c0 = arith.constant 0 : index
    %c0_10 = arith.constant 0 : index
    %37 = vector.load %arg7[%c0, %c0_10] : memref<128x128xf32, #tpu.memory_space<vmem>>, vector<128x128xf32>
    %c0_11 = arith.constant 0 : index
    %c0_12 = arith.constant 0 : index
    %38 = vector.load %arg0[%c0_11, %c0_12] : memref<32x128xf32, #tpu.memory_space<vmem>>, vector<32x128xf32>
    %c1_i32_13 = arith.constant 1 : i32
    %39 = tpu.dynamic_rotate %38 by %c1_i32_13 dim 0 : vector<32x128xf32>, i32 -> vector<32x128xf32>
    %cst = arith.constant 0.000000e+00 : f32
    %40 = vector.broadcast %cst : f32 to vector<32x128xf32>
    %41 = arith.select %18, %39, %40 : vector<32x128xi1>, vector<32x128xf32>
    %c31_i32 = arith.constant 31 : i32
    %42 = tpu.dynamic_rotate %38 by %c31_i32 dim 0 : vector<32x128xf32>, i32 -> vector<32x128xf32>
    %cst_14 = arith.constant 0.000000e+00 : f32
    %43 = vector.broadcast %cst_14 : f32 to vector<32x128xf32>
    %44 = arith.select %36, %42, %43 : vector<32x128xi1>, vector<32x128xf32>
    %45 = tpu.concatenate %41, %38, %44 in 1 : vector<32x128xf32>, vector<32x128xf32>, vector<32x128xf32> -> vector<32x384xf32>
    %c0_15 = arith.constant 0 : index
    %c0_16 = arith.constant 0 : index
    %46 = vector.load %arg1[%c0_15, %c0_16] : memref<384x128xf32, #tpu.memory_space<vmem>>, vector<384x128xf32>
    %cst_17 = arith.constant dense<0.000000e+00> : vector<32x128xf32>
    %47 = tpu.matmul %45, %46, %cst_17 {dimension_numbers = #tpu.dot_dimension_numbers<[1], [0], [0], [1], [0, 0, 1, 1], [], []>} : vector<32x384xf32>, vector<384x128xf32>, vector<32x128xf32> -> vector<32x128xf32>
    %c0_18 = arith.constant 0 : index
    %c0_19 = arith.constant 0 : index
    %48 = vector.load %arg3[%c0_18, %c0_19] : memref<1x128xf32, #tpu.memory_space<vmem>>, vector<1x128xf32>
    %c0_20 = arith.constant 0 : index
    %c0_21 = arith.constant 0 : index
    %49 = vector.load %arg4[%c0_20, %c0_21] : memref<1x128xf32, #tpu.memory_space<vmem>>, vector<1x128xf32>
    %cst_22 = arith.constant dense<0.000000e+00> : vector<32x128xf32>
    %50 = tpu.matmul %47, %37, %cst_22 {dimension_numbers = #tpu.dot_dimension_numbers<[1], [0], [0], [1], [0, 0, 1, 1], [], []>} : vector<32x128xf32>, vector<128x128xf32>, vector<32x128xf32> -> vector<32x128xf32>
    %cst_23 = arith.constant dense<0.000000e+00> : vector<128xf32>
    %51 = vector.multi_reduction <add>, %50, %cst_23 [0] : vector<32x128xf32> to vector<128xf32>
    %52 = vector.shape_cast %51 : vector<128xf32> to vector<1x128xf32>
    %53 = arith.mulf %47, %47 : vector<32x128xf32>
    %cst_24 = arith.constant dense<0.000000e+00> : vector<32x128xf32>
    %54 = tpu.matmul %53, %37, %cst_24 {dimension_numbers = #tpu.dot_dimension_numbers<[1], [0], [0], [1], [0, 0, 1, 1], [], []>} : vector<32x128xf32>, vector<128x128xf32>, vector<32x128xf32> -> vector<32x128xf32>
    %cst_25 = arith.constant dense<0.000000e+00> : vector<128xf32>
    %55 = vector.multi_reduction <add>, %54, %cst_25 [0] : vector<32x128xf32> to vector<128xf32>
    %56 = vector.shape_cast %55 : vector<128xf32> to vector<1x128xf32>
    %cst_26 = arith.constant 0.001953125 : f32
    %57 = vector.broadcast %cst_26 : f32 to vector<1x128xf32>
    %58 = arith.mulf %52, %57 : vector<1x128xf32>
    %cst_27 = arith.constant 0.001953125 : f32
    %59 = vector.broadcast %cst_27 : f32 to vector<1x128xf32>
    %60 = arith.mulf %56, %59 : vector<1x128xf32>
    %61 = arith.mulf %58, %58 : vector<1x128xf32>
    %62 = arith.subf %60, %61 : vector<1x128xf32>
    %cst_28 = arith.constant 9.99999974E-6 : f32
    %63 = vector.broadcast %cst_28 : f32 to vector<1x128xf32>
    %64 = arith.addf %62, %63 : vector<1x128xf32>
    %65 = math.rsqrt %64 : vector<1x128xf32>
    %66 = vector.broadcast %58 : vector<1x128xf32> to vector<32x128xf32>
    %67 = arith.subf %47, %66 : vector<32x128xf32>
    %68 = arith.mulf %65, %48 : vector<1x128xf32>
    %69 = vector.broadcast %68 : vector<1x128xf32> to vector<32x128xf32>
    %70 = arith.mulf %67, %69 : vector<32x128xf32>
    %71 = vector.broadcast %49 : vector<1x128xf32> to vector<32x128xf32>
    %72 = arith.addf %70, %71 : vector<32x128xf32>
    %cst_29 = arith.constant 0.000000e+00 : f32
    %73 = vector.broadcast %cst_29 : f32 to vector<32x128xf32>
    %74 = arith.maximumf %72, %73 : vector<32x128xf32>
    %c1_i32_30 = arith.constant 1 : i32
    %75 = tpu.dynamic_rotate %74 by %c1_i32_30 dim 0 : vector<32x128xf32>, i32 -> vector<32x128xf32>
    %cst_31 = arith.constant 0.000000e+00 : f32
    %76 = vector.broadcast %cst_31 : f32 to vector<32x128xf32>
    %77 = arith.select %18, %75, %76 : vector<32x128xi1>, vector<32x128xf32>
    %c31_i32_32 = arith.constant 31 : i32
    %78 = tpu.dynamic_rotate %74 by %c31_i32_32 dim 0 : vector<32x128xf32>, i32 -> vector<32x128xf32>
    %cst_33 = arith.constant 0.000000e+00 : f32
    %79 = vector.broadcast %cst_33 : f32 to vector<32x128xf32>
    %80 = arith.select %36, %78, %79 : vector<32x128xi1>, vector<32x128xf32>
    %81 = tpu.concatenate %77, %74, %80 in 1 : vector<32x128xf32>, vector<32x128xf32>, vector<32x128xf32> -> vector<32x384xf32>
    %c0_34 = arith.constant 0 : index
    %c0_35 = arith.constant 0 : index
    %82 = vector.load %arg2[%c0_34, %c0_35] : memref<384x128xf32, #tpu.memory_space<vmem>>, vector<384x128xf32>
    %cst_36 = arith.constant dense<0.000000e+00> : vector<32x128xf32>
    %83 = tpu.matmul %81, %82, %cst_36 {dimension_numbers = #tpu.dot_dimension_numbers<[1], [0], [0], [1], [0, 0, 1, 1], [], []>} : vector<32x384xf32>, vector<384x128xf32>, vector<32x128xf32> -> vector<32x128xf32>
    %c0_37 = arith.constant 0 : index
    %c0_38 = arith.constant 0 : index
    %84 = vector.load %arg5[%c0_37, %c0_38] : memref<1x128xf32, #tpu.memory_space<vmem>>, vector<1x128xf32>
    %c0_39 = arith.constant 0 : index
    %c0_40 = arith.constant 0 : index
    %85 = vector.load %arg6[%c0_39, %c0_40] : memref<1x128xf32, #tpu.memory_space<vmem>>, vector<1x128xf32>
    %cst_41 = arith.constant dense<0.000000e+00> : vector<32x128xf32>
    %86 = tpu.matmul %83, %37, %cst_41 {dimension_numbers = #tpu.dot_dimension_numbers<[1], [0], [0], [1], [0, 0, 1, 1], [], []>} : vector<32x128xf32>, vector<128x128xf32>, vector<32x128xf32> -> vector<32x128xf32>
    %cst_42 = arith.constant dense<0.000000e+00> : vector<128xf32>
    %87 = vector.multi_reduction <add>, %86, %cst_42 [0] : vector<32x128xf32> to vector<128xf32>
    %88 = vector.shape_cast %87 : vector<128xf32> to vector<1x128xf32>
    %89 = arith.mulf %83, %83 : vector<32x128xf32>
    %cst_43 = arith.constant dense<0.000000e+00> : vector<32x128xf32>
    %90 = tpu.matmul %89, %37, %cst_43 {dimension_numbers = #tpu.dot_dimension_numbers<[1], [0], [0], [1], [0, 0, 1, 1], [], []>} : vector<32x128xf32>, vector<128x128xf32>, vector<32x128xf32> -> vector<32x128xf32>
    %cst_44 = arith.constant dense<0.000000e+00> : vector<128xf32>
    %91 = vector.multi_reduction <add>, %90, %cst_44 [0] : vector<32x128xf32> to vector<128xf32>
    %92 = vector.shape_cast %91 : vector<128xf32> to vector<1x128xf32>
    %cst_45 = arith.constant 0.001953125 : f32
    %93 = vector.broadcast %cst_45 : f32 to vector<1x128xf32>
    %94 = arith.mulf %88, %93 : vector<1x128xf32>
    %cst_46 = arith.constant 0.001953125 : f32
    %95 = vector.broadcast %cst_46 : f32 to vector<1x128xf32>
    %96 = arith.mulf %92, %95 : vector<1x128xf32>
    %97 = arith.mulf %94, %94 : vector<1x128xf32>
    %98 = arith.subf %96, %97 : vector<1x128xf32>
    %cst_47 = arith.constant 9.99999974E-6 : f32
    %99 = vector.broadcast %cst_47 : f32 to vector<1x128xf32>
    %100 = arith.addf %98, %99 : vector<1x128xf32>
    %101 = math.rsqrt %100 : vector<1x128xf32>
    %102 = vector.broadcast %94 : vector<1x128xf32> to vector<32x128xf32>
    %103 = arith.subf %83, %102 : vector<32x128xf32>
    %104 = arith.mulf %101, %84 : vector<1x128xf32>
    %105 = vector.broadcast %104 : vector<1x128xf32> to vector<32x128xf32>
    %106 = arith.mulf %103, %105 : vector<32x128xf32>
    %107 = vector.broadcast %85 : vector<1x128xf32> to vector<32x128xf32>
    %108 = arith.addf %106, %107 : vector<32x128xf32>
    %109 = arith.addf %108, %38 : vector<32x128xf32>
    %cst_48 = arith.constant 0.000000e+00 : f32
    %110 = vector.broadcast %cst_48 : f32 to vector<32x128xf32>
    %111 = arith.maximumf %109, %110 : vector<32x128xf32>
    %c0_49 = arith.constant 0 : index
    %c0_50 = arith.constant 0 : index
    %112 = vector.load %arg8[%c0_49, %c0_50] : memref<32x128xf32, #tpu.memory_space<vmem>>, vector<32x128xf32>
    tpu.vector_store %arg8[%c0_49, %c0_50], %111 {strides = array<i32>} : memref<32x128xf32, #tpu.memory_space<vmem>>, vector<32x128xf32>,
    return
  }
}

</mosaic_0001>

<llo_original>
// kernel: tpu_custom_call.1
$region0: #{tpu_custom_call.1}
  #allocation0 [shape = 'u32[]', space=smem, size = 0x4, offset = 0x4, fixed_abs, tag = 'smem constant byte address 0x4 - core index']
  #allocation1 [shape = 'u32[144,128]{1,0:T(1,128)}', space=vmem, size = 0x12000, scoped, tag = 'internal scratch']
  %s0 = inlined_call_operand.hbm [shape: f32[32,128], index: 0, kind: input, shape index: {}]
  %s1 = inlined_call_operand.hbm [shape: f32[384,128], index: 1, kind: input, shape index: {}]
  %s2 = inlined_call_operand.hbm [shape: f32[384,128], index: 2, kind: input, shape index: {}]
  %s3 = inlined_call_operand.vmem [shape: f32[1,128], index: 3, kind: input, shape index: {}]
  %s4 = inlined_call_operand.vmem [shape: f32[1,128], index: 4, kind: input, shape index: {}]
  %s5 = inlined_call_operand.vmem [shape: f32[1,128], index: 5, kind: input, shape index: {}]
  %s6 = inlined_call_operand.vmem [shape: f32[1,128], index: 6, kind: input, shape index: {}]
  %s7 = inlined_call_operand.hbm [shape: f32[128,128], index: 7, kind: input, shape index: {}]
  %s8 = inlined_call_operand.hbm [shape: f32[32,128], index: 8, kind: output, shape index: {}]
  %s9 = sld [smem:[#allocation0]]
  $region58: #{tpu_custom_call.1} parent=0
    _
  %s11 = ssub.s32 1, %s9
  %s12 = scalar_select 0, %s11, %s9
  $region1: #{tpu_custom_call.1} parent=0
    #allocation2 [shape = 'u8[16384]{0}', space=vmem, size = 0x4000, scoped, tag = 'input window, operand 0, single buffered']
    #allocation3 [shape = 's32[1]{0}', space=sflag, size = 0x4, scoped, tag = 'scoped memory for tpu_custom_call.1']
    #allocation4 [shape = 's32[1]{0}', space=sflag, size = 0x4, scoped, tag = 'scoped memory for tpu_custom_call.1']
    #allocation5 [shape = 'u8[196608]{0}', space=vmem, size = 0x30000, scoped, tag = 'input window, operand 1, single buffered']
    #allocation6 [shape = 's32[1]{0}', space=sflag, size = 0x4, scoped, tag = 'scoped memory for tpu_custom_call.1']
    #allocation7 [shape = 'u8[196608]{0}', space=vmem, size = 0x30000, scoped, tag = 'input window, operand 2, single buffered']
    #allocation8 [shape = 'u8[65536]{0}', space=vmem, size = 0x10000, scoped, tag = 'input window, operand 7, single buffered']
    #allocation9 [shape = 's32[1]{0}', space=sflag, size = 0x4, scoped, tag = 'scoped memory for tpu_custom_call.1']
    #allocation10 [shape = 'u8[16384]{0}', space=vmem, size = 0x4000, scoped, tag = 'output window, operand 0, single buffered']
    %13 = vsyncpa [#allocation3], 0
    %14 = vsyncpa [#allocation6], 0
    %15 = vsyncpa [#allocation9], 0
    %16 = vsyncpa [#allocation4], 0
    // Predicated region
    $region2: #{tpu_custom_call.1} parent=1 // pred_check
      _
    $region3: #{tpu_custom_call.1} parent=1 // pred_check_branch
      %18 = sbr.rel (0) target = $region5
    $region4: #{tpu_custom_call.1} parent=1 // pred_region
      %s20 = ssub.s32 512, 512
      %21 = vsyncadd [#allocation3], %s20
      %s22 = sshll.u32 [#allocation2], 4
      %s23 = int_to_ptr.vmem [resolvable:$true] %s22
      %28 = dma.hbm_to_vmem [thread:$0]  %s0, 512, %s23, [#allocation3], 128, 128, 8
    $region5: #{tpu_custom_call.1} parent=1 // pred_fallthru
      _
    // Predicated region
    $region6: #{tpu_custom_call.1} parent=1 // pred_check
      _
    $region7: #{tpu_custom_call.1} parent=1 // pred_check_branch
      %30 = sbr.rel (0) target = $region9
    $region8: #{tpu_custom_call.1} parent=1 // pred_region
      %s32 = ssub.s32 6144, 6144
      %33 = vsyncadd [#allocation6], %s32
      %s34 = sshll.u32 [#allocation5], 4
      %s35 = int_to_ptr.vmem [resolvable:$true] %s34
      %40 = dma.hbm_to_vmem [thread:$0]  %s1, 6144, %s35, [#allocation6], 128, 128, 8
    $region9: #{tpu_custom_call.1} parent=1 // pred_fallthru
      _
    // Predicated region
    $region10: #{tpu_custom_call.1} parent=1 // pred_check
      _
    $region11: #{tpu_custom_call.1} parent=1 // pred_check_branch
      %42 = sbr.rel (0) target = $region13
    $region12: #{tpu_custom_call.1} parent=1 // pred_region
      %s44 = ssub.s32 6144, 6144
      %45 = vsyncadd [#allocation6], %s44
      %s46 = sshll.u32 [#allocation7], 4
      %s47 = int_to_ptr.vmem [resolvable:$true] %s46
      %52 = dma.hbm_to_vmem [thread:$0]  %s2, 6144, %s47, [#allocation6], 128, 128, 8
    $region13: #{tpu_custom_call.1} parent=1 // pred_fallthru
      _
    // Predicated region
    $region14: #{tpu_custom_call.1} parent=1 // pred_check
      _
    $region15: #{tpu_custom_call.1} parent=1 // pred_check_branch
      %54 = sbr.rel (0) target = $region17
    $region16: #{tpu_custom_call.1} parent=1 // pred_region
      _
    $region17: #{tpu_custom_call.1} parent=1 // pred_fallthru
      _
    // Predicated region
    $region18: #{tpu_custom_call.1} parent=1 // pred_check
      _
    $region19: #{tpu_custom_call.1} parent=1 // pred_check_branch
      %56 = sbr.rel (0) target = $region21
    $region20: #{tpu_custom_call.1} parent=1 // pred_region
      _
    $region21: #{tpu_custom_call.1} parent=1 // pred_fallthru
      _
    // Predicated region
    $region22: #{tpu_custom_call.1} parent=1 // pred_check
      _
    $region23: #{tpu_custom_call.1} parent=1 // pred_check_branch
      %58 = sbr.rel (0) target = $region25
    $region24: #{tpu_custom_call.1} parent=1 // pred_region
      _
    $region25: #{tpu_custom_call.1} parent=1 // pred_fallthru
      _
    // Predicated region
    $region26: #{tpu_custom_call.1} parent=1 // pred_check
      _
    $region27: #{tpu_custom_call.1} parent=1 // pred_check_branch
      %60 = sbr.rel (0) target = $region29
    $region28: #{tpu_custom_call.1} parent=1 // pred_region
      _
    $region29: #{tpu_custom_call.1} parent=1 // pred_fallthru
      _
    // Predicated region
    $region30: #{tpu_custom_call.1} parent=1 // pred_check
      _
    $region31: #{tpu_custom_call.1} parent=1 // pred_check_branch
      %62 = sbr.rel (0) target = $region33
    $region32: #{tpu_custom_call.1} parent=1 // pred_region
      %s64 = ssub.s32 2048, 2048
      %65 = vsyncadd [#allocation9], %s64
      %s66 = sshll.u32 [#allocation8], 4
      %s67 = int_to_ptr.vmem [resolvable:$true] %s66
      %72 = dma.hbm_to_vmem [thread:$0]  %s7, 2048, %s67, [#allocation9], 128, 128, 8
    $region33: #{tpu_custom_call.1} parent=1 // pred_fallthru
      _
    // Predicated region
    $region34: #{tpu_custom_call.1} parent=1 // pred_check
      _
    $region35: #{tpu_custom_call.1} parent=1 // pred_check_branch
      %74 = sbr.rel (0) target = $region37
    $region36: #{tpu_custom_call.1} parent=1 // pred_region
      %75 = dma.done [#allocation3], 512
    $region37: #{tpu_custom_call.1} parent=1 // pred_fallthru
      _
    // Predicated region
    $region38: #{tpu_custom_call.1} parent=1 // pred_check
      _
    $region39: #{tpu_custom_call.1} parent=1 // pred_check_branch
      %77 = sbr.rel (0) target = $region41
    $region40: #{tpu_custom_call.1} parent=1 // pred_region
      %78 = dma.done [#allocation6], 6144
    $region41: #{tpu_custom_call.1} parent=1 // pred_fallthru
      _
    // Predicated region
    $region42: #{tpu_custom_call.1} parent=1 // pred_check
      _
    $region43: #{tpu_custom_call.1} parent=1 // pred_check_branch
      %80 = sbr.rel (0) target = $region45
    $region44: #{tpu_custom_call.1} parent=1 // pred_region
      %81 = dma.done [#allocation6], 6144
    $region45: #{tpu_custom_call.1} parent=1 // pred_fallthru
      _
    // Predicated region
    $region46: #{tpu_custom_call.1} parent=1 // pred_check
      _
    $region47: #{tpu_custom_call.1} parent=1 // pred_check_branch
      %83 = sbr.rel (0) target = $region49
    $region48: #{tpu_custom_call.1} parent=1 // pred_region
      %84 = dma.done [#allocation9], 2048
    $region49: #{tpu_custom_call.1} parent=1 // pred_fallthru
      _
    %v85 = vlaneseq
    %v86 = vshrl.u32 %v85, 7
    %v87 = vadd.s32 %v86, 8
    %v88 = vadd.s32 %v86, 16
    %v89 = vadd.s32 %v86, 24
    %vm90 = vcmp.lt.s32.totalorder %v86, 0
    %v91 = vsub.s32 0, %v86
    %v92 = vsel %vm90, %v91, %v86
    %v93 = vshrl.u32 %v92, 4
    %v94 = vand.u32 %v92, 15
    %v95 = vsub.s32 0, %v94
    %v96 = vsel %vm90, %v95, %v94
    %vm97 = vcmp.lt.s32.totalorder %v87, 0
    %v98 = vsub.s32 0, %v87
    %v99 = vsel %vm97, %v98, %v87
    %v100 = vshrl.u32 %v99, 4
    %v101 = vand.u32 %v99, 15
    %v102 = vsub.s32 0, %v101
    %v103 = vsel %vm97, %v102, %v101
    %vm104 = vcmp.lt.s32.totalorder %v88, 0
    %v105 = vsub.s32 0, %v88
    %v106 = vsel %vm104, %v105, %v88
    %v107 = vshrl.u32 %v106, 4
    %v108 = vand.u32 %v106, 15
    %v109 = vsub.s32 0, %v108
    %v110 = vsel %vm104, %v109, %v108
    %vm111 = vcmp.lt.s32.totalorder %v89, 0
    %v112 = vsub.s32 0, %v89
    %v113 = vsel %vm111, %v112, %v89
    %v114 = vshrl.u32 %v113, 4
    %v115 = vand.u32 %v113, 15
    %v116 = vsub.s32 0, %v115
    %v117 = vsel %vm111, %v116, %v115
    %vm118 = vcmp.ne.s32.totalorder %v96, 0
    %vm119 = vcmp.ne.s32.totalorder %v103, 0
    %vm120 = vcmp.ne.s32.totalorder %v110, 0
    %vm121 = vcmp.ne.s32.totalorder %v117, 0
    %vm122 = vcmp.lt.s32.totalorder %v96, 0
    %vm123 = vcmp.lt.s32.totalorder %v103, 0
    %vm124 = vcmp.lt.s32.totalorder %v110, 0
    %vm125 = vcmp.lt.s32.totalorder %v117, 0
    %vm126 = vmand %vm122, %vm118
    %vm127 = vmand %vm123, %vm119
    %vm128 = vmand %vm124, %vm120
    %vm129 = vmand %vm125, %vm121
    %v130 = vadd.s32 %v96, 16
    %v131 = vadd.s32 %v103, 16
    %v132 = vadd.s32 %v110, 16
    %v133 = vadd.s32 %v117, 16
    %v134 = vsel %vm126, %v130, %v96
    %v135 = vsel %vm127, %v131, %v103
    %v136 = vsel %vm128, %v132, %v110
    %v137 = vsel %vm129, %v133, %v117
    %vm138 = vcmp.ne.s32.totalorder %v134, 0
    %vm139 = vcmp.ne.s32.totalorder %v135, 0
    %vm140 = vcmp.ne.s32.totalorder %v136, 0
    %vm141 = vcmp.ne.s32.totalorder %v137, 0
    %vm142 = vcmp.ne.s32.totalorder %v134, 15
    %vm143 = vcmp.ne.s32.totalorder %v135, 15
    %vm144 = vcmp.ne.s32.totalorder %v136, 15
    %vm145 = vcmp.ne.s32.totalorder %v137, 15
    %v146 = vld [vmem:[#allocation8] sm:$0xff]
    %v147 = vld [vmem:[#allocation8 + $0x8] sm:$0xff]
    %v148 = vld [vmem:[#allocation8 + $0x10] sm:$0xff]
    %v149 = vld [vmem:[#allocation8 + $0x18] sm:$0xff]
    %v150 = vld [vmem:[#allocation8 + $0x20] sm:$0xff]
    %v151 = vld [vmem:[#allocation8 + $0x28] sm:$0xff]
    %v152 = vld [vmem:[#allocation8 + $0x30] sm:$0xff]
    %v153 = vld [vmem:[#allocation8 + $0x38] sm:$0xff]
    %v154 = vld [vmem:[#allocation8 + $0x40] sm:$0xff]
    %v155 = vld [vmem:[#allocation8 + $0x48] sm:$0xff]
    %v156 = vld [vmem:[#allocation8 + $0x50] sm:$0xff]
    %v157 = vld [vmem:[#allocation8 + $0x58] sm:$0xff]
    %v158 = vld [vmem:[#allocation8 + $0x60] sm:$0xff]
    %v159 = vld [vmem:[#allocation8 + $0x68] sm:$0xff]
    %v160 = vld [vmem:[#allocation8 + $0x70] sm:$0xff]
    %v161 = vld [vmem:[#allocation8 + $0x78] sm:$0xff]
    %v162 = vld [vmem:[#allocation2] sm:$0xff]
    %v163 = vld [vmem:[#allocation2 + $0x8] sm:$0xff]
    %v164 = vld [vmem:[#allocation2 + $0x10] sm:$0xff]
    %v165 = vld [vmem:[#allocation2 + $0x18] sm:$0xff]
    %v166 = vrot.slane %v162, 7
    %v167 = vrot.slane %v163, 7
    %v168 = vrot.slane %v164, 7
    %v169 = vrot.slane %v165, 7
    %vm170 = vcmp.lt.s32.totalorder %v86, 1
    %v171 = vsel %vm170, %v168, %v169
    %v172 = vsel %vm170, %v167, %v168
    %v173 = vsel %vm170, %v166, %v167
    %v174 = vsel %vm170, %v169, %v166
    %v175 = vsel %vm138, %v174, 0.0
    %v176 = vsel %vm139, %v173, 0.0
    %v177 = vsel %vm140, %v172, 0.0
    %v178 = vsel %vm141, %v171, 0.0
    %v179 = vrot.slane %v162, 1
    %v180 = vrot.slane %v163, 1
    %v181 = vrot.slane %v164, 1
    %v182 = vrot.slane %v165, 1
    %vm183 = vcmp.lt.s32.totalorder %v86, 7
    %v184 = vsel %vm183, %v181, %v182
    %v185 = vsel %vm183, %v180, %v181
    %v186 = vsel %vm183, %v179, %v180
    %v187 = vsel %vm183, %v182, %v179
    %v188 = vsel %vm142, %v186, 0.0
    %v189 = vsel %vm143, %v185, 0.0
    %v190 = vsel %vm144, %v184, 0.0
    %v191 = vsel %vm145, %v187, 0.0
    %v192 = vld [vmem:[#allocation5] sm:$0xff]
    %v193 = vld [vmem:[#allocation5 + $0x8] sm:$0xff]
    %v194 = vld [vmem:[#allocation5 + $0x10] sm:$0xff]
    %v195 = vld [vmem:[#allocation5 + $0x18] sm:$0xff]
    %v196 = vld [vmem:[#allocation5 + $0x20] sm:$0xff]
    %v197 = vld [vmem:[#allocation5 + $0x28] sm:$0xff]
    %v198 = vld [vmem:[#allocation5 + $0x30] sm:$0xff]
    %v199 = vld [vmem:[#allocation5 + $0x38] sm:$0xff]
    %v200 = vld [vmem:[#allocation5 + $0x40] sm:$0xff]
    %v201 = vld [vmem:[#allocation5 + $0x48] sm:$0xff]
    %v202 = vld [vmem:[#allocation5 + $0x50] sm:$0xff]
    %v203 = vld [vmem:[#allocation5 + $0x58] sm:$0xff]
    %v204 = vld [vmem:[#allocation5 + $0x60] sm:$0xff]
    %v205 = vld [vmem:[#allocation5 + $0x68] sm:$0xff]
    %v206 = vld [vmem:[#allocation5 + $0x70] sm:$0xff]
    %v207 = vld [vmem:[#allocation5 + $0x78] sm:$0xff]
    %v208 = vld [vmem:[#allocation5 + $0x80] sm:$0xff]
    %v209 = vld [vmem:[#allocation5 + $0x88] sm:$0xff]
    %v210 = vld [vmem:[#allocation5 + $0x90] sm:$0xff]
    %v211 = vld [vmem:[#allocation5 + $0x98] sm:$0xff]
    %v212 = vld [vmem:[#allocation5 + $0xa0] sm:$0xff]
    %v213 = vld [vmem:[#allocation5 + $0xa8] sm:$0xff]
    %v214 = vld [vmem:[#allocation5 + $0xb0] sm:$0xff]
    %v215 = vld [vmem:[#allocation5 + $0xb8] sm:$0xff]
    %v216 = vld [vmem:[#allocation5 + $0xc0] sm:$0xff]
    %v217 = vld [vmem:[#allocation5 + $0xc8] sm:$0xff]
    %v218 = vld [vmem:[#allocation5 + $0xd0] sm:$0xff]
    %v219 = vld [vmem:[#allocation5 + $0xd8] sm:$0xff]
    %v220 = vld [vmem:[#allocation5 + $0xe0] sm:$0xff]
    %v221 = vld [vmem:[#allocation5 + $0xe8] sm:$0xff]
    %v222 = vld [vmem:[#allocation5 + $0xf0] sm:$0xff]
    %v223 = vld [vmem:[#allocation5 + $0xf8] sm:$0xff]
    %v224 = vld [vmem:[#allocation5 + $0x100] sm:$0xff]
    %v225 = vld [vmem:[#allocation5 + $0x108] sm:$0xff]
    %v226 = vld [vmem:[#allocation5 + $0x110] sm:$0xff]
    %v227 = vld [vmem:[#allocation5 + $0x118] sm:$0xff]
    %v228 = vld [vmem:[#allocation5 + $0x120] sm:$0xff]
    %v229 = vld [vmem:[#allocation5 + $0x128] sm:$0xff]
    %v230 = vld [vmem:[#allocation5 + $0x130] sm:$0xff]
    %v231 = vld [vmem:[#allocation5 + $0x138] sm:$0xff]
    %v232 = vld [vmem:[#allocation5 + $0x140] sm:$0xff]
    %v233 = vld [vmem:[#allocation5 + $0x148] sm:$0xff]
    %v234 = vld [vmem:[#allocation5 + $0x150] sm:$0xff]
    %v235 = vld [vmem:[#allocation5 + $0x158] sm:$0xff]
    %v236 = vld [vmem:[#allocation5 + $0x160] sm:$0xff]
    %v237 = vld [vmem:[#allocation5 + $0x168] sm:$0xff]
    %v238 = vld [vmem:[#allocation5 + $0x170] sm:$0xff]
    %v239 = vld [vmem:[#allocation5 + $0x178] sm:$0xff]
    %240 = vmatprep.subr.mxu0 0.0
    %241 = vmatpush1.msra.mxu0 %v192
    %242 = vmatprep.subr.mxu0 0.0
    %243 = vmatpush1.msra.mxu0 %v193
    %244 = vmatprep.subr.mxu0 0.0
    %245 = vmatpush1.msra.mxu0 %v194
    %246 = vmatprep.subr.mxu0 0.0
    %247 = vmatpush1.msra.mxu0 %v195
    %248 = vmatprep.subr.mxu0 0.0
    %249 = vmatpush1.msra.mxu0 %v196
    %250 = vmatprep.subr.mxu0 0.0
    %251 = vmatpush1.msra.mxu0 %v197
    %252 = vmatprep.subr.mxu0 0.0
    %253 = vmatpush1.msra.mxu0 %v198
    %254 = vmatprep.subr.mxu0 0.0
    %255 = vmatpush1.msra.mxu0 %v199
    %256 = vmatprep.subr.mxu0 0.0
    %257 = vmatpush1.msra.mxu0 %v200
    %258 = vmatprep.subr.mxu0 0.0
    %259 = vmatpush1.msra.mxu0 %v201
    %260 = vmatprep.subr.mxu0 0.0
    %261 = vmatpush1.msra.mxu0 %v202
    %262 = vmatprep.subr.mxu0 0.0
    %263 = vmatpush1.msra.mxu0 %v203
    %264 = vmatprep.subr.mxu0 0.0
    %265 = vmatpush1.msra.mxu0 %v204
    %266 = vmatprep.subr.mxu0 0.0
    %267 = vmatpush1.msra.mxu0 %v205
    %268 = vmatprep.subr.mxu0 0.0
    %269 = vmatpush1.msra.mxu0 %v206
    %270 = vmatprep.subr.mxu0 0.0
    %271 = vmatpush1.msra.mxu0 %v207
    %272 = vmatprep.subr.mxu0 0.0
    %273 = vmatpush1.msra.mxu0 %v208
    %274 = vmatprep.subr.mxu0 0.0
    %275 = vmatpush1.msra.mxu0 %v209
    %276 = vmatprep.subr.mxu0 0.0
    %277 = vmatpush1.msra.mxu0 %v210
    %278 = vmatprep.subr.mxu0 0.0
    %279 = vmatpush1.msra.mxu0 %v211
    %280 = vmatprep.subr.mxu0 0.0
    %281 = vmatpush1.msra.mxu0 %v212
    %282 = vmatprep.subr.mxu0 0.0
    %283 = vmatpush1.msra.mxu0 %v213
    %284 = vmatprep.subr.mxu0 0.0
    %285 = vmatpush1.msra.mxu0 %v214
    %286 = vmatprep.subr.mxu0 0.0
    %287 = vmatpush1.msra.mxu0 %v215
    %288 = vmatprep.subr.mxu0 0.0
    %289 = vmatpush1.msra.mxu0 %v216
    %290 = vmatprep.subr.mxu0 0.0
    %291 = vmatpush1.msra.mxu0 %v217
    %292 = vmatprep.subr.mxu0 0.0
    %293 = vmatpush1.msra.mxu0 %v218
    %294 = vmatprep.subr.mxu0 0.0
    %295 = vmatpush1.msra.mxu0 %v219
    %296 = vmatprep.subr.mxu0 0.0
    %297 = vmatpush1.msra.mxu0 %v220
    %298 = vmatprep.subr.mxu0 0.0
    %299 = vmatpush1.msra.mxu0 %v221
    %300 = vmatprep.subr.mxu0 0.0
    %301 = vmatpush1.msra.mxu0 %v222
    %302 = vmatprep.subr.mxu0 0.0
    %303 = vmatpush1.msra.mxu0 %v223
    %304 = vmatprep.mubr.f32.mxu0 %v162
    %305 = vmatmul.mubr.f32.gmra.mrb[0].mxu0 %v175
    %v306 = vpop.f32.mrb[0].mxu0
    %v307 = vadd.f32 0.0, %v306
    %v308 = vpop.f32.mrb[0].mxu0
    %309 = vmatprep.mubr.f32.mxu0 %v163
    %310 = vmatmul.mubr.f32.gmra.mrb[0].mxu0 %v176
    %v311 = vpop.f32.mrb[0].mxu0
    %v312 = vadd.f32 0.0, %v311
    %v313 = vpop.f32.mrb[0].mxu0
    %314 = vmatprep.mubr.f32.mxu0 %v164
    %315 = vmatmul.mubr.f32.gmra.mrb[0].mxu0 %v177
    %v316 = vpop.f32.mrb[0].mxu0
    %v317 = vadd.f32 0.0, %v316
    %v318 = vpop.f32.mrb[0].mxu0
    %319 = vmatprep.mubr.f32.mxu0 %v165
    %320 = vmatmul.mubr.f32.gmra.mrb[0].mxu0 %v178
    %v321 = vpop.f32.mrb[0].mxu0
    %v322 = vadd.f32 0.0, %v321
    %v323 = vpop.f32.mrb[0].mxu0
    %324 = vdwg.mxu0
    %325 = vmatprep.subr.mxu0 0.0
    %326 = vmatpush1.msra.mxu0 %v224
    %327 = vmatprep.subr.mxu0 0.0
    %328 = vmatpush1.msra.mxu0 %v225
    %329 = vmatprep.subr.mxu0 0.0
    %330 = vmatpush1.msra.mxu0 %v226
    %331 = vmatprep.subr.mxu0 0.0
    %332 = vmatpush1.msra.mxu0 %v227
    %333 = vmatprep.subr.mxu0 0.0
    %334 = vmatpush1.msra.mxu0 %v228
    %335 = vmatprep.subr.mxu0 0.0
    %336 = vmatpush1.msra.mxu0 %v229
    %337 = vmatprep.subr.mxu0 0.0
    %338 = vmatpush1.msra.mxu0 %v230
    %339 = vmatprep.subr.mxu0 0.0
    %340 = vmatpush1.msra.mxu0 %v231
    %341 = vmatprep.subr.mxu0 0.0
    %342 = vmatpush1.msra.mxu0 %v232
    %343 = vmatprep.subr.mxu0 0.0
    %344 = vmatpush1.msra.mxu0 %v233
    %345 = vmatprep.subr.mxu0 0.0
    %346 = vmatpush1.msra.mxu0 %v234
    %347 = vmatprep.subr.mxu0 0.0
    %348 = vmatpush1.msra.mxu0 %v235
    %349 = vmatprep.subr.mxu0 0.0
    %350 = vmatpush1.msra.mxu0 %v236
    %351 = vmatprep.subr.mxu0 0.0
    %352 = vmatpush1.msra.mxu0 %v237
    %353 = vmatprep.subr.mxu0 0.0
    %354 = vmatpush1.msra.mxu0 %v238
    %355 = vmatprep.subr.mxu0 0.0
    %356 = vmatpush1.msra.mxu0 %v239
    %357 = vmatprep.subr.mxu0 0.0
    %358 = vmatpush1.msra.mxu0 0.0
    %359 = vmatprep.subr.mxu0 0.0
    %360 = vmatpush1.msra.mxu0 0.0
    %361 = vmatprep.subr.mxu0 0.0
    %362 = vmatpush1.msra.mxu0 0.0
    %363 = vmatprep.subr.mxu0 0.0
    %364 = vmatpush1.msra.mxu0 0.0
    %365 = vmatprep.subr.mxu0 0.0
    %366 = vmatpush1.msra.mxu0 0.0
    %367 = vmatprep.subr.mxu0 0.0
    %368 = vmatpush1.msra.mxu0 0.0
    %369 = vmatprep.subr.mxu0 0.0
    %370 = vmatpush1.msra.mxu0 0.0
    %371 = vmatprep.subr.mxu0 0.0
    %372 = vmatpush1.msra.mxu0 0.0
    %373 = vmatprep.subr.mxu0 0.0
    %374 = vmatpush1.msra.mxu0 0.0
    %375 = vmatprep.subr.mxu0 0.0
    %376 = vmatpush1.msra.mxu0 0.0
    %377 = vmatprep.subr.mxu0 0.0
    %378 = vmatpush1.msra.mxu0 0.0
    %379 = vmatprep.subr.mxu0 0.0
    %380 = vmatpush1.msra.mxu0 0.0
    %381 = vmatprep.subr.mxu0 0.0
    %382 = vmatpush1.msra.mxu0 0.0
    %383 = vmatprep.subr.mxu0 0.0
    %384 = vmatpush1.msra.mxu0 0.0
    %385 = vmatprep.subr.mxu0 0.0
    %386 = vmatpush1.msra.mxu0 0.0
    %387 = vmatprep.subr.mxu0 0.0
    %388 = vmatpush1.msra.mxu0 0.0
    %389 = vmatprep.mubr.f32.mxu0 0.0
    %390 = vmatmul.mubr.f32.gmra.mrb[0].mxu0 %v188
    %v391 = vpop.f32.mrb[0].mxu0
    %v392 = vadd.f32 %v307, %v391
    %v393 = vpop.f32.mrb[0].mxu0
    %394 = vmatprep.mubr.f32.mxu0 0.0
    %395 = vmatmul.mubr.f32.gmra.mrb[0].mxu0 %v189
    %v396 = vpop.f32.mrb[0].mxu0
    %v397 = vadd.f32 %v312, %v396
    %v398 = vpop.f32.mrb[0].mxu0
    %399 = vmatprep.mubr.f32.mxu0 0.0
    %400 = vmatmul.mubr.f32.gmra.mrb[0].mxu0 %v190
    %v401 = vpop.f32.mrb[0].mxu0
    %v402 = vadd.f32 %v317, %v401
    %v403 = vpop.f32.mrb[0].mxu0
    %404 = vmatprep.mubr.f32.mxu0 0.0
    %405 = vmatmul.mubr.f32.gmra.mrb[0].mxu0 %v191
    %v406 = vpop.f32.mrb[0].mxu0
    %v407 = vadd.f32 %v322, %v406
    %v408 = vpop.f32.mrb[0].mxu0
    %409 = vdwg.mxu0
    %v410 = vld [vmem:[%s3] sm:$0x1]
    %v411 = vld [vmem:[%s4] sm:$0x1]
    %412 = vmatprep.subr.mxu0 0.0
    %413 = vmatpush1.msra.mxu0 %v146
    %414 = vmatprep.subr.mxu0 0.0
    %415 = vmatpush1.msra.mxu0 %v147
    %416 = vmatprep.subr.mxu0 0.0
    %417 = vmatpush1.msra.mxu0 %v148
    %418 = vmatprep.subr.mxu0 0.0
    %419 = vmatpush1.msra.mxu0 %v149
    %420 = vmatprep.subr.mxu0 0.0
    %421 = vmatpush1.msra.mxu0 %v150
    %422 = vmatprep.subr.mxu0 0.0
    %423 = vmatpush1.msra.mxu0 %v151
    %424 = vmatprep.subr.mxu0 0.0
    %425 = vmatpush1.msra.mxu0 %v152
    %426 = vmatprep.subr.mxu0 0.0
    %427 = vmatpush1.msra.mxu0 %v153
    %428 = vmatprep.subr.mxu0 0.0
    %429 = vmatpush1.msra.mxu0 %v154
    %430 = vmatprep.subr.mxu0 0.0
    %431 = vmatpush1.msra.mxu0 %v155
    %432 = vmatprep.subr.mxu0 0.0
    %433 = vmatpush1.msra.mxu0 %v156
    %434 = vmatprep.subr.mxu0 0.0
    %435 = vmatpush1.msra.mxu0 %v157
    %436 = vmatprep.subr.mxu0 0.0
    %437 = vmatpush1.msra.mxu0 %v158
    %438 = vmatprep.subr.mxu0 0.0
    %439 = vmatpush1.msra.mxu0 %v159
    %440 = vmatprep.subr.mxu0 0.0
    %441 = vmatpush1.msra.mxu0 %v160
    %442 = vmatprep.subr.mxu0 0.0
    %443 = vmatpush1.msra.mxu0 %v161
    %444 = vmatprep.subr.mxu0 0.0
    %445 = vmatpush1.msra.mxu0 0.0
    %446 = vmatprep.subr.mxu0 0.0
    %447 = vmatpush1.msra.mxu0 0.0
    %448 = vmatprep.subr.mxu0 0.0
    %449 = vmatpush1.msra.mxu0 0.0
    %450 = vmatprep.subr.mxu0 0.0
    %451 = vmatpush1.msra.mxu0 0.0
    %452 = vmatprep.subr.mxu0 0.0
    %453 = vmatpush1.msra.mxu0 0.0
    %454 = vmatprep.subr.mxu0 0.0
    %455 = vmatpush1.msra.mxu0 0.0
    %456 = vmatprep.subr.mxu0 0.0
    %457 = vmatpush1.msra.mxu0 0.0
    %458 = vmatprep.subr.mxu0 0.0
    %459 = vmatpush1.msra.mxu0 0.0
    %460 = vmatprep.subr.mxu0 0.0
    %461 = vmatpush1.msra.mxu0 0.0
    %462 = vmatprep.subr.mxu0 0.0
    %463 = vmatpush1.msra.mxu0 0.0
    %464 = vmatprep.subr.mxu0 0.0
    %465 = vmatpush1.msra.mxu0 0.0
    %466 = vmatprep.subr.mxu0 0.0
    %467 = vmatpush1.msra.mxu0 0.0
    %468 = vmatprep.subr.mxu0 0.0
    %469 = vmatpush1.msra.mxu0 0.0
    %470 = vmatprep.subr.mxu0 0.0
    %471 = vmatpush1.msra.mxu0 0.0
    %472 = vmatprep.subr.mxu0 0.0
    %473 = vmatpush1.msra.mxu0 0.0
    %474 = vmatprep.subr.mxu0 0.0
    %475 = vmatpush1.msra.mxu0 0.0
    %476 = vmatprep.mubr.f32.mxu0 0.0
    %477 = vmatmul.mubr.f32.gmra.mrb[0].mxu0 %v392
    %v478 = vpop.f32.mrb[0].mxu0
    %v479 = vadd.f32 0.0, %v478
    %v480 = vpop.f32.mrb[0].mxu0
    %481 = vmatprep.mubr.f32.mxu0 0.0
    %482 = vmatmul.mubr.f32.gmra.mrb[0].mxu0 %v397
    %v483 = vpop.f32.mrb[0].mxu0
    %v484 = vadd.f32 0.0, %v483
    %v485 = vpop.f32.mrb[0].mxu0
    %486 = vmatprep.mubr.f32.mxu0 0.0
    %487 = vmatmul.mubr.f32.gmra.mrb[0].mxu0 %v402
    %v488 = vpop.f32.mrb[0].mxu0
    %v489 = vadd.f32 0.0, %v488
    %v490 = vpop.f32.mrb[0].mxu0
    %491 = vmatprep.mubr.f32.mxu0 0.0
    %492 = vmatmul.mubr.f32.gmra.mrb[0].mxu0 %v407
    %v493 = vpop.f32.mrb[0].mxu0
    %v494 = vadd.f32 0.0, %v493
    %v495 = vpop.f32.mrb[0].mxu0
    %496 = vdwg.mxu0
    %v497 = vadd.f32 %v479, %v484
    %v498 = vadd.f32 %v497, %v489
    %v499 = vadd.f32 %v498, %v494
    %v500 = vrot.slane %v499, 4
    %v501 = vadd.f32 %v499, %v500
    %v502 = vrot.slane %v501, 2
    %v503 = vadd.f32 %v501, %v502
    %v504 = vrot.slane %v503, 1
    %v505 = vadd.f32 %v503, %v504
    %v506 = vmul.f32 %v392, %v392
    %v507 = vmul.f32 %v397, %v397
    %v508 = vmul.f32 %v402, %v402
    %v509 = vmul.f32 %v407, %v407
    %510 = vmatprep.subr.mxu0 0.0
    %511 = vmatpush1.msra.mxu0 %v146
    %512 = vmatprep.subr.mxu0 0.0
    %513 = vmatpush1.msra.mxu0 %v147
    %514 = vmatprep.subr.mxu0 0.0
    %515 = vmatpush1.msra.mxu0 %v148
    %516 = vmatprep.subr.mxu0 0.0
    %517 = vmatpush1.msra.mxu0 %v149
    %518 = vmatprep.subr.mxu0 0.0
    %519 = vmatpush1.msra.mxu0 %v150
    %520 = vmatprep.subr.mxu0 0.0
    %521 = vmatpush1.msra.mxu0 %v151
    %522 = vmatprep.subr.mxu0 0.0
    %523 = vmatpush1.msra.mxu0 %v152
    %524 = vmatprep.subr.mxu0 0.0
    %525 = vmatpush1.msra.mxu0 %v153
    %526 = vmatprep.subr.mxu0 0.0
    %527 = vmatpush1.msra.mxu0 %v154
    %528 = vmatprep.subr.mxu0 0.0
    %529 = vmatpush1.msra.mxu0 %v155
    %530 = vmatprep.subr.mxu0 0.0
    %531 = vmatpush1.msra.mxu0 %v156
    %532 = vmatprep.subr.mxu0 0.0
    %533 = vmatpush1.msra.mxu0 %v157
    %534 = vmatprep.subr.mxu0 0.0
    %535 = vmatpush1.msra.mxu0 %v158
    %536 = vmatprep.subr.mxu0 0.0
    %537 = vmatpush1.msra.mxu0 %v159
    %538 = vmatprep.subr.mxu0 0.0
    %539 = vmatpush1.msra.mxu0 %v160
    %540 = vmatprep.subr.mxu0 0.0
    %541 = vmatpush1.msra.mxu0 %v161
    %542 = vmatprep.subr.mxu0 0.0
    %543 = vmatpush1.msra.mxu0 0.0
    %544 = vmatprep.subr.mxu0 0.0
    %545 = vmatpush1.msra.mxu0 0.0
    %546 = vmatprep.subr.mxu0 0.0
    %547 = vmatpush1.msra.mxu0 0.0
    %548 = vmatprep.subr.mxu0 0.0
    %549 = vmatpush1.msra.mxu0 0.0
    %550 = vmatprep.subr.mxu0 0.0
    %551 = vmatpush1.msra.mxu0 0.0
    %552 = vmatprep.subr.mxu0 0.0
    %553 = vmatpush1.msra.mxu0 0.0
    %554 = vmatprep.subr.mxu0 0.0
    %555 = vmatpush1.msra.mxu0 0.0
    %556 = vmatprep.subr.mxu0 0.0
    %557 = vmatpush1.msra.mxu0 0.0
    %558 = vmatprep.subr.mxu0 0.0
    %559 = vmatpush1.msra.mxu0 0.0
    %560 = vmatprep.subr.mxu0 0.0
    %561 = vmatpush1.msra.mxu0 0.0
    %562 = vmatprep.subr.mxu0 0.0
    %563 = vmatpush1.msra.mxu0 0.0
    %564 = vmatprep.subr.mxu0 0.0
    %565 = vmatpush1.msra.mxu0 0.0
    %566 = vmatprep.subr.mxu0 0.0
    %567 = vmatpush1.msra.mxu0 0.0
    %568 = vmatprep.subr.mxu0 0.0
    %569 = vmatpush1.msra.mxu0 0.0
    %570 = vmatprep.subr.mxu0 0.0
    %571 = vmatpush1.msra.mxu0 0.0
    %572 = vmatprep.subr.mxu0 0.0
    %573 = vmatpush1.msra.mxu0 0.0
    %574 = vmatprep.mubr.f32.mxu0 0.0
    %575 = vmatmul.mubr.f32.gmra.mrb[0].mxu0 %v506
    %v576 = vpop.f32.mrb[0].mxu0
    %v577 = vadd.f32 0.0, %v576
    %v578 = vpop.f32.mrb[0].mxu0
    %579 = vmatprep.mubr.f32.mxu0 0.0
    %580 = vmatmul.mubr.f32.gmra.mrb[0].mxu0 %v507
    %v581 = vpop.f32.mrb[0].mxu0
    %v582 = vadd.f32 0.0, %v581
    %v583 = vpop.f32.mrb[0].mxu0
    %584 = vmatprep.mubr.f32.mxu0 0.0
    %585 = vmatmul.mubr.f32.gmra.mrb[0].mxu0 %v508
    %v586 = vpop.f32.mrb[0].mxu0
    %v587 = vadd.f32 0.0, %v586
    %v588 = vpop.f32.mrb[0].mxu0
    %589 = vmatprep.mubr.f32.mxu0 0.0
    %590 = vmatmul.mubr.f32.gmra.mrb[0].mxu0 %v509
    %v591 = vpop.f32.mrb[0].mxu0
    %v592 = vadd.f32 0.0, %v591
    %v593 = vpop.f32.mrb[0].mxu0
    %594 = vdwg.mxu0
    %v595 = vadd.f32 %v577, %v582
    %v596 = vadd.f32 %v595, %v587
    %v597 = vadd.f32 %v596, %v592
    %v598 = vrot.slane %v597, 4
    %v599 = vadd.f32 %v597, %v598
    %v600 = vrot.slane %v599, 2
    %v601 = vadd.f32 %v599, %v600
    %v602 = vrot.slane %v601, 1
    %v603 = vadd.f32 %v601, %v602
    %v604 = vmul.f32 %v505, 0.001953125
    %v605 = vmul.f32 %v603, 0.001953125
    %v606 = vmul.f32 %v604, %v604
    %v607 = vsub.f32 %v605, %v606
    %v608 = vadd.f32 %v607, 1e-05
    %v609 = vrsqrt.pop %v608
    %v610 = vsub.f32 %v392, %v604
    %v611 = vsub.f32 %v397, %v604
    %v612 = vsub.f32 %v402, %v604
    %v613 = vsub.f32 %v407, %v604
    %v614 = vmul.f32 %v609, %v410
    %v615 = vlaneseq
    %v616 = vshrl.u32 %v615, 7
    %v617 = vsub.s32 0, %v616
    %v618 = vrot.slane %v614, %v617
    %v619 = vmul.f32 %v610, %v618
    %v620 = vmul.f32 %v611, %v618
    %v621 = vmul.f32 %v612, %v618
    %v622 = vmul.f32 %v613, %v618
    %v624 = vlaneseq
    %v625 = vshrl.u32 %v624, 7
    %v626 = vsub.s32 0, %v625
    %v627 = vrot.slane %v411, %v626
    %v629 = vadd.f32 %v619, %v627
    %v630 = vadd.f32 %v620, %v627
    %v631 = vadd.f32 %v621, %v627
    %v632 = vadd.f32 %v622, %v627
    %v633 = vmax.f32 %v629, 0.0
    %v634 = vmax.f32 %v630, 0.0
    %v635 = vmax.f32 %v631, 0.0
    %v636 = vmax.f32 %v632, 0.0
    %v637 = vrot.slane %v633, 7
    %v638 = vrot.slane %v634, 7
    %v639 = vrot.slane %v635, 7
    %v640 = vrot.slane %v636, 7
    %v641 = vsel %vm170, %v639, %v640
    %v642 = vsel %vm170, %v638, %v639
    %v643 = vsel %vm170, %v637, %v638
    %v644 = vsel %vm170, %v640, %v637
    %v645 = vsel %vm138, %v644, 0.0
    %v646 = vsel %vm139, %v643, 0.0
    %v647 = vsel %vm140, %v642, 0.0
    %v648 = vsel %vm141, %v641, 0.0
    %v649 = vrot.slane %v633, 1
    %v650 = vrot.slane %v634, 1
    %v651 = vrot.slane %v635, 1
    %v652 = vrot.slane %v636, 1
    %v653 = vsel %vm183, %v651, %v652
    %v654 = vsel %vm183, %v650, %v651
    %v655 = vsel %vm183, %v649, %v650
    %v656 = vsel %vm183, %v652, %v649
    %v657 = vsel %vm142, %v655, 0.0
    %v658 = vsel %vm143, %v654, 0.0
    %v659 = vsel %vm144, %v653, 0.0
    %v660 = vsel %vm145, %v656, 0.0
    %v661 = vld [vmem:[#allocation7] sm:$0xff]
    %v662 = vld [vmem:[#allocation7 + $0x8] sm:$0xff]
    %v663 = vld [vmem:[#allocation7 + $0x10] sm:$0xff]
    %v664 = vld [vmem:[#allocation7 + $0x18] sm:$0xff]
    %v665 = vld [vmem:[#allocation7 + $0x20] sm:$0xff]
    %v666 = vld [vmem:[#allocation7 + $0x28] sm:$0xff]
    %v667 = vld [vmem:[#allocation7 + $0x30] sm:$0xff]
    %v668 = vld [vmem:[#allocation7 + $0x38] sm:$0xff]
    %v669 = vld [vmem:[#allocation7 + $0x40] sm:$0xff]
    %v670 = vld [vmem:[#allocation7 + $0x48] sm:$0xff]
    %v671 = vld [vmem:[#allocation7 + $0x50] sm:$0xff]
    %v672 = vld [vmem:[#allocation7 + $0x58] sm:$0xff]
    %v673 = vld [vmem:[#allocation7 + $0x60] sm:$0xff]
    %v674 = vld [vmem:[#allocation7 + $0x68] sm:$0xff]
    %v675 = vld [vmem:[#allocation7 + $0x70] sm:$0xff]
    %v676 = vld [vmem:[#allocation7 + $0x78] sm:$0xff]
    %v677 = vld [vmem:[#allocation7 + $0x80] sm:$0xff]
    %v678 = vld [vmem:[#allocation7 + $0x88] sm:$0xff]
    %v679 = vld [vmem:[#allocation7 + $0x90] sm:$0xff]
    %v680 = vld [vmem:[#allocation7 + $0x98] sm:$0xff]
    %v681 = vld [vmem:[#allocation7 + $0xa0] sm:$0xff]
    %v682 = vld [vmem:[#allocation7 + $0xa8] sm:$0xff]
    %v683 = vld [vmem:[#allocation7 + $0xb0] sm:$0xff]
    %v684 = vld [vmem:[#allocation7 + $0xb8] sm:$0xff]
    %v685 = vld [vmem:[#allocation7 + $0xc0] sm:$0xff]
    %v686 = vld [vmem:[#allocation7 + $0xc8] sm:$0xff]
    %v687 = vld [vmem:[#allocation7 + $0xd0] sm:$0xff]
    %v688 = vld [vmem:[#allocation7 + $0xd8] sm:$0xff]
    %v689 = vld [vmem:[#allocation7 + $0xe0] sm:$0xff]
    %v690 = vld [vmem:[#allocation7 + $0xe8] sm:$0xff]
    %v691 = vld [vmem:[#allocation7 + $0xf0] sm:$0xff]
    %v692 = vld [vmem:[#allocation7 + $0xf8] sm:$0xff]
    %v693 = vld [vmem:[#allocation7 + $0x100] sm:$0xff]
    %v694 = vld [vmem:[#allocation7 + $0x108] sm:$0xff]
    %v695 = vld [vmem:[#allocation7 + $0x110] sm:$0xff]
    %v696 = vld [vmem:[#allocation7 + $0x118] sm:$0xff]
    %v697 = vld [vmem:[#allocation7 + $0x120] sm:$0xff]
    %v698 = vld [vmem:[#allocation7 + $0x128] sm:$0xff]
    %v699 = vld [vmem:[#allocation7 + $0x130] sm:$0xff]
    %v700 = vld [vmem:[#allocation7 + $0x138] sm:$0xff]
    %v701 = vld [vmem:[#allocation7 + $0x140] sm:$0xff]
    %v702 = vld [vmem:[#allocation7 + $0x148] sm:$0xff]
    %v703 = vld [vmem:[#allocation7 + $0x150] sm:$0xff]
    %v704 = vld [vmem:[#allocation7 + $0x158] sm:$0xff]
    %v705 = vld [vmem:[#allocation7 + $0x160] sm:$0xff]
    %v706 = vld [vmem:[#allocation7 + $0x168] sm:$0xff]
    %v707 = vld [vmem:[#allocation7 + $0x170] sm:$0xff]
    %v708 = vld [vmem:[#allocation7 + $0x178] sm:$0xff]
    %709 = vmatprep.subr.mxu0 0.0
    %710 = vmatpush1.msra.mxu0 %v661
    %711 = vmatprep.subr.mxu0 0.0
    %712 = vmatpush1.msra.mxu0 %v662
    %713 = vmatprep.subr.mxu0 0.0
    %714 = vmatpush1.msra.mxu0 %v663
    %715 = vmatprep.subr.mxu0 0.0
    %716 = vmatpush1.msra.mxu0 %v664
    %717 = vmatprep.subr.mxu0 0.0
    %718 = vmatpush1.msra.mxu0 %v665
    %719 = vmatprep.subr.mxu0 0.0
    %720 = vmatpush1.msra.mxu0 %v666
    %721 = vmatprep.subr.mxu0 0.0
    %722 = vmatpush1.msra.mxu0 %v667
    %723 = vmatprep.subr.mxu0 0.0
    %724 = vmatpush1.msra.mxu0 %v668
    %725 = vmatprep.subr.mxu0 0.0
    %726 = vmatpush1.msra.mxu0 %v669
    %727 = vmatprep.subr.mxu0 0.0
    %728 = vmatpush1.msra.mxu0 %v670
    %729 = vmatprep.subr.mxu0 0.0
    %730 = vmatpush1.msra.mxu0 %v671
    %731 = vmatprep.subr.mxu0 0.0
    %732 = vmatpush1.msra.mxu0 %v672
    %733 = vmatprep.subr.mxu0 0.0
    %734 = vmatpush1.msra.mxu0 %v673
    %735 = vmatprep.subr.mxu0 0.0
    %736 = vmatpush1.msra.mxu0 %v674
    %737 = vmatprep.subr.mxu0 0.0
    %738 = vmatpush1.msra.mxu0 %v675
    %739 = vmatprep.subr.mxu0 0.0
    %740 = vmatpush1.msra.mxu0 %v676
    %741 = vmatprep.subr.mxu0 0.0
    %742 = vmatpush1.msra.mxu0 %v677
    %743 = vmatprep.subr.mxu0 0.0
    %744 = vmatpush1.msra.mxu0 %v678
    %745 = vmatprep.subr.mxu0 0.0
    %746 = vmatpush1.msra.mxu0 %v679
    %747 = vmatprep.subr.mxu0 0.0
    %748 = vmatpush1.msra.mxu0 %v680
    %749 = vmatprep.subr.mxu0 0.0
    %750 = vmatpush1.msra.mxu0 %v681
    %751 = vmatprep.subr.mxu0 0.0
    %752 = vmatpush1.msra.mxu0 %v682
    %753 = vmatprep.subr.mxu0 0.0
    %754 = vmatpush1.msra.mxu0 %v683
    %755 = vmatprep.subr.mxu0 0.0
    %756 = vmatpush1.msra.mxu0 %v684
    %757 = vmatprep.subr.mxu0 0.0
    %758 = vmatpush1.msra.mxu0 %v685
    %759 = vmatprep.subr.mxu0 0.0
    %760 = vmatpush1.msra.mxu0 %v686
    %761 = vmatprep.subr.mxu0 0.0
    %762 = vmatpush1.msra.mxu0 %v687
    %763 = vmatprep.subr.mxu0 0.0
    %764 = vmatpush1.msra.mxu0 %v688
    %765 = vmatprep.subr.mxu0 0.0
    %766 = vmatpush1.msra.mxu0 %v689
    %767 = vmatprep.subr.mxu0 0.0
    %768 = vmatpush1.msra.mxu0 %v690
    %769 = vmatprep.subr.mxu0 0.0
    %770 = vmatpush1.msra.mxu0 %v691
    %771 = vmatprep.subr.mxu0 0.0
    %772 = vmatpush1.msra.mxu0 %v692
    %773 = vmatprep.mubr.f32.mxu0 %v633
    %774 = vmatmul.mubr.f32.gmra.mrb[0].mxu0 %v645
    %v775 = vpop.f32.mrb[0].mxu0
    %v776 = vadd.f32 0.0, %v775
    %v777 = vpop.f32.mrb[0].mxu0
    %778 = vmatprep.mubr.f32.mxu0 %v634
    %779 = vmatmul.mubr.f32.gmra.mrb[0].mxu0 %v646
    %v780 = vpop.f32.mrb[0].mxu0
    %v781 = vadd.f32 0.0, %v780
    %v782 = vpop.f32.mrb[0].mxu0
    %783 = vmatprep.mubr.f32.mxu0 %v635
    %784 = vmatmul.mubr.f32.gmra.mrb[0].mxu0 %v647
    %v785 = vpop.f32.mrb[0].mxu0
    %v786 = vadd.f32 0.0, %v785
    %v787 = vpop.f32.mrb[0].mxu0
    %788 = vmatprep.mubr.f32.mxu0 %v636
    %789 = vmatmul.mubr.f32.gmra.mrb[0].mxu0 %v648
    %v790 = vpop.f32.mrb[0].mxu0
    %v791 = vadd.f32 0.0, %v790
    %v792 = vpop.f32.mrb[0].mxu0
    %793 = vdwg.mxu0
    %794 = vmatprep.subr.mxu0 0.0
    %795 = vmatpush1.msra.mxu0 %v693
    %796 = vmatprep.subr.mxu0 0.0
    %797 = vmatpush1.msra.mxu0 %v694
    %798 = vmatprep.subr.mxu0 0.0
    %799 = vmatpush1.msra.mxu0 %v695
    %800 = vmatprep.subr.mxu0 0.0
    %801 = vmatpush1.msra.mxu0 %v696
    %802 = vmatprep.subr.mxu0 0.0
    %803 = vmatpush1.msra.mxu0 %v697
    %804 = vmatprep.subr.mxu0 0.0
    %805 = vmatpush1.msra.mxu0 %v698
    %806 = vmatprep.subr.mxu0 0.0
    %807 = vmatpush1.msra.mxu0 %v699
    %808 = vmatprep.subr.mxu0 0.0
    %809 = vmatpush1.msra.mxu0 %v700
    %810 = vmatprep.subr.mxu0 0.0
    %811 = vmatpush1.msra.mxu0 %v701
    %812 = vmatprep.subr.mxu0 0.0
    %813 = vmatpush1.msra.mxu0 %v702
    %814 = vmatprep.subr.mxu0 0.0
    %815 = vmatpush1.msra.mxu0 %v703
    %816 = vmatprep.subr.mxu0 0.0
    %817 = vmatpush1.msra.mxu0 %v704
    %818 = vmatprep.subr.mxu0 0.0
    %819 = vmatpush1.msra.mxu0 %v705
    %820 = vmatprep.subr.mxu0 0.0
    %821 = vmatpush1.msra.mxu0 %v706
    %822 = vmatprep.subr.mxu0 0.0
    %823 = vmatpush1.msra.mxu0 %v707
    %824 = vmatprep.subr.mxu0 0.0
    %825 = vmatpush1.msra.mxu0 %v708
    %826 = vmatprep.subr.mxu0 0.0
    %827 = vmatpush1.msra.mxu0 0.0
    %828 = vmatprep.subr.mxu0 0.0
    %829 = vmatpush1.msra.mxu0 0.0
    %830 = vmatprep.subr.mxu0 0.0
    %831 = vmatpush1.msra.mxu0 0.0
    %832 = vmatprep.subr.mxu0 0.0
    %833 = vmatpush1.msra.mxu0 0.0
    %834 = vmatprep.subr.mxu0 0.0
    %835 = vmatpush1.msra.mxu0 0.0
    %836 = vmatprep.subr.mxu0 0.0
    %837 = vmatpush1.msra.mxu0 0.0
    %838 = vmatprep.subr.mxu0 0.0
    %839 = vmatpush1.msra.mxu0 0.0
    %840 = vmatprep.subr.mxu0 0.0
    %841 = vmatpush1.msra.mxu0 0.0
    %842 = vmatprep.subr.mxu0 0.0
    %843 = vmatpush1.msra.mxu0 0.0
    %844 = vmatprep.subr.mxu0 0.0
    %845 = vmatpush1.msra.mxu0 0.0
    %846 = vmatprep.subr.mxu0 0.0
    %847 = vmatpush1.msra.mxu0 0.0
    %848 = vmatprep.subr.mxu0 0.0
    %849 = vmatpush1.msra.mxu0 0.0
    %850 = vmatprep.subr.mxu0 0.0
    %851 = vmatpush1.msra.mxu0 0.0
    %852 = vmatprep.subr.mxu0 0.0
    %853 = vmatpush1.msra.mxu0 0.0
    %854 = vmatprep.subr.mxu0 0.0
    %855 = vmatpush1.msra.mxu0 0.0
    %856 = vmatprep.subr.mxu0 0.0
    %857 = vmatpush1.msra.mxu0 0.0
    %858 = vmatprep.mubr.f32.mxu0 0.0
    %859 = vmatmul.mubr.f32.gmra.mrb[0].mxu0 %v657
    %v860 = vpop.f32.mrb[0].mxu0
    %v861 = vadd.f32 %v776, %v860
    %v862 = vpop.f32.mrb[0].mxu0
    %863 = vmatprep.mubr.f32.mxu0 0.0
    %864 = vmatmul.mubr.f32.gmra.mrb[0].mxu0 %v658
    %v865 = vpop.f32.mrb[0].mxu0
    %v866 = vadd.f32 %v781, %v865
    %v867 = vpop.f32.mrb[0].mxu0
    %868 = vmatprep.mubr.f32.mxu0 0.0
    %869 = vmatmul.mubr.f32.gmra.mrb[0].mxu0 %v659
    %v870 = vpop.f32.mrb[0].mxu0
    %v871 = vadd.f32 %v786, %v870
    %v872 = vpop.f32.mrb[0].mxu0
    %873 = vmatprep.mubr.f32.mxu0 0.0
    %874 = vmatmul.mubr.f32.gmra.mrb[0].mxu0 %v660
    %v875 = vpop.f32.mrb[0].mxu0
    %v876 = vadd.f32 %v791, %v875
    %v877 = vpop.f32.mrb[0].mxu0
    %878 = vdwg.mxu0
    %v879 = vld [vmem:[%s5] sm:$0x1]
    %v880 = vld [vmem:[%s6] sm:$0x1]
    %881 = vmatprep.subr.mxu0 0.0
    %882 = vmatpush1.msra.mxu0 %v146
    %883 = vmatprep.subr.mxu0 0.0
    %884 = vmatpush1.msra.mxu0 %v147
    %885 = vmatprep.subr.mxu0 0.0
    %886 = vmatpush1.msra.mxu0 %v148
    %887 = vmatprep.subr.mxu0 0.0
    %888 = vmatpush1.msra.mxu0 %v149
    %889 = vmatprep.subr.mxu0 0.0
    %890 = vmatpush1.msra.mxu0 %v150
    %891 = vmatprep.subr.mxu0 0.0
    %892 = vmatpush1.msra.mxu0 %v151
    %893 = vmatprep.subr.mxu0 0.0
    %894 = vmatpush1.msra.mxu0 %v152
    %895 = vmatprep.subr.mxu0 0.0
    %896 = vmatpush1.msra.mxu0 %v153
    %897 = vmatprep.subr.mxu0 0.0
    %898 = vmatpush1.msra.mxu0 %v154
    %899 = vmatprep.subr.mxu0 0.0
    %900 = vmatpush1.msra.mxu0 %v155
    %901 = vmatprep.subr.mxu0 0.0
    %902 = vmatpush1.msra.mxu0 %v156
    %903 = vmatprep.subr.mxu0 0.0
    %904 = vmatpush1.msra.mxu0 %v157
    %905 = vmatprep.subr.mxu0 0.0
    %906 = vmatpush1.msra.mxu0 %v158
    %907 = vmatprep.subr.mxu0 0.0
    %908 = vmatpush1.msra.mxu0 %v159
    %909 = vmatprep.subr.mxu0 0.0
    %910 = vmatpush1.msra.mxu0 %v160
    %911 = vmatprep.subr.mxu0 0.0
    %912 = vmatpush1.msra.mxu0 %v161
    %913 = vmatprep.subr.mxu0 0.0
    %914 = vmatpush1.msra.mxu0 0.0
    %915 = vmatprep.subr.mxu0 0.0
    %916 = vmatpush1.msra.mxu0 0.0
    %917 = vmatprep.subr.mxu0 0.0
    %918 = vmatpush1.msra.mxu0 0.0
    %919 = vmatprep.subr.mxu0 0.0
    %920 = vmatpush1.msra.mxu0 0.0
    %921 = vmatprep.subr.mxu0 0.0
    %922 = vmatpush1.msra.mxu0 0.0
    %923 = vmatprep.subr.mxu0 0.0
    %924 = vmatpush1.msra.mxu0 0.0
    %925 = vmatprep.subr.mxu0 0.0
    %926 = vmatpush1.msra.mxu0 0.0
    %927 = vmatprep.subr.mxu0 0.0
    %928 = vmatpush1.msra.mxu0 0.0
    %929 = vmatprep.subr.mxu0 0.0
    %930 = vmatpush1.msra.mxu0 0.0
    %931 = vmatprep.subr.mxu0 0.0
    %932 = vmatpush1.msra.mxu0 0.0
    %933 = vmatprep.subr.mxu0 0.0
    %934 = vmatpush1.msra.mxu0 0.0
    %935 = vmatprep.subr.mxu0 0.0
    %936 = vmatpush1.msra.mxu0 0.0
    %937 = vmatprep.subr.mxu0 0.0
    %938 = vmatpush1.msra.mxu0 0.0
    %939 = vmatprep.subr.mxu0 0.0
    %940 = vmatpush1.msra.mxu0 0.0
    %941 = vmatprep.subr.mxu0 0.0
    %942 = vmatpush1.msra.mxu0 0.0
    %943 = vmatprep.subr.mxu0 0.0
    %944 = vmatpush1.msra.mxu0 0.0
    %945 = vmatprep.mubr.f32.mxu0 0.0
    %946 = vmatmul.mubr.f32.gmra.mrb[0].mxu0 %v861
    %v947 = vpop.f32.mrb[0].mxu0
    %v948 = vadd.f32 0.0, %v947
    %v949 = vpop.f32.mrb[0].mxu0
    %950 = vmatprep.mubr.f32.mxu0 0.0
    %951 = vmatmul.mubr.f32.gmra.mrb[0].mxu0 %v866
    %v952 = vpop.f32.mrb[0].mxu0
    %v953 = vadd.f32 0.0, %v952
    %v954 = vpop.f32.mrb[0].mxu0
    %955 = vmatprep.mubr.f32.mxu0 0.0
    %956 = vmatmul.mubr.f32.gmra.mrb[0].mxu0 %v871
    %v957 = vpop.f32.mrb[0].mxu0
    %v958 = vadd.f32 0.0, %v957
    %v959 = vpop.f32.mrb[0].mxu0
    %960 = vmatprep.mubr.f32.mxu0 0.0
    %961 = vmatmul.mubr.f32.gmra.mrb[0].mxu0 %v876
    %v962 = vpop.f32.mrb[0].mxu0
    %v963 = vadd.f32 0.0, %v962
    %v964 = vpop.f32.mrb[0].mxu0
    %965 = vdwg.mxu0
    %v966 = vadd.f32 %v948, %v953
    %v967 = vadd.f32 %v966, %v958
    %v968 = vadd.f32 %v967, %v963
    %v969 = vrot.slane %v968, 4
    %v970 = vadd.f32 %v968, %v969
    %v971 = vrot.slane %v970, 2
    %v972 = vadd.f32 %v970, %v971
    %v973 = vrot.slane %v972, 1
    %v974 = vadd.f32 %v972, %v973
    %v975 = vmul.f32 %v861, %v861
    %v976 = vmul.f32 %v866, %v866
    %v977 = vmul.f32 %v871, %v871
    %v978 = vmul.f32 %v876, %v876
    %979 = vmatprep.subr.mxu0 0.0
    %980 = vmatpush1.msra.mxu0 %v146
    %981 = vmatprep.subr.mxu0 0.0
    %982 = vmatpush1.msra.mxu0 %v147
    %983 = vmatprep.subr.mxu0 0.0
    %984 = vmatpush1.msra.mxu0 %v148
    %985 = vmatprep.subr.mxu0 0.0
    %986 = vmatpush1.msra.mxu0 %v149
    %987 = vmatprep.subr.mxu0 0.0
    %988 = vmatpush1.msra.mxu0 %v150
    %989 = vmatprep.subr.mxu0 0.0
    %990 = vmatpush1.msra.mxu0 %v151
    %991 = vmatprep.subr.mxu0 0.0
    %992 = vmatpush1.msra.mxu0 %v152
    %993 = vmatprep.subr.mxu0 0.0
    %994 = vmatpush1.msra.mxu0 %v153
    %995 = vmatprep.subr.mxu0 0.0
    %996 = vmatpush1.msra.mxu0 %v154
    %997 = vmatprep.subr.mxu0 0.0
    %998 = vmatpush1.msra.mxu0 %v155
    %999 = vmatprep.subr.mxu0 0.0
    %1000 = vmatpush1.msra.mxu0 %v156
    %1001 = vmatprep.subr.mxu0 0.0
    %1002 = vmatpush1.msra.mxu0 %v157
    %1003 = vmatprep.subr.mxu0 0.0
    %1004 = vmatpush1.msra.mxu0 %v158
    %1005 = vmatprep.subr.mxu0 0.0
    %1006 = vmatpush1.msra.mxu0 %v159
    %1007 = vmatprep.subr.mxu0 0.0
    %1008 = vmatpush1.msra.mxu0 %v160
    %1009 = vmatprep.subr.mxu0 0.0
    %1010 = vmatpush1.msra.mxu0 %v161
    %1011 = vmatprep.subr.mxu0 0.0
    %1012 = vmatpush1.msra.mxu0 0.0
    %1013 = vmatprep.subr.mxu0 0.0
    %1014 = vmatpush1.msra.mxu0 0.0
    %1015 = vmatprep.subr.mxu0 0.0
    %1016 = vmatpush1.msra.mxu0 0.0
    %1017 = vmatprep.subr.mxu0 0.0
    %1018 = vmatpush1.msra.mxu0 0.0
    %1019 = vmatprep.subr.mxu0 0.0
    %1020 = vmatpush1.msra.mxu0 0.0
    %1021 = vmatprep.subr.mxu0 0.0
    %1022 = vmatpush1.msra.mxu0 0.0
    %1023 = vmatprep.subr.mxu0 0.0
    %1024 = vmatpush1.msra.mxu0 0.0
    %1025 = vmatprep.subr.mxu0 0.0
    %1026 = vmatpush1.msra.mxu0 0.0
    %1027 = vmatprep.subr.mxu0 0.0
    %1028 = vmatpush1.msra.mxu0 0.0
    %1029 = vmatprep.subr.mxu0 0.0
    %1030 = vmatpush1.msra.mxu0 0.0
    %1031 = vmatprep.subr.mxu0 0.0
    %1032 = vmatpush1.msra.mxu0 0.0
    %1033 = vmatprep.subr.mxu0 0.0
    %1034 = vmatpush1.msra.mxu0 0.0
    %1035 = vmatprep.subr.mxu0 0.0
    %1036 = vmatpush1.msra.mxu0 0.0
    %1037 = vmatprep.subr.mxu0 0.0
    %1038 = vmatpush1.msra.mxu0 0.0
    %1039 = vmatprep.subr.mxu0 0.0
    %1040 = vmatpush1.msra.mxu0 0.0
    %1041 = vmatprep.subr.mxu0 0.0
    %1042 = vmatpush1.msra.mxu0 0.0
    %1043 = vmatprep.mubr.f32.mxu0 0.0
    %1044 = vmatmul.mubr.f32.gmra.mrb[0].mxu0 %v975
    %v1045 = vpop.f32.mrb[0].mxu0
    %v1046 = vadd.f32 0.0, %v1045
    %v1047 = vpop.f32.mrb[0].mxu0
    %1048 = vmatprep.mubr.f32.mxu0 0.0
    %1049 = vmatmul.mubr.f32.gmra.mrb[0].mxu0 %v976
    %v1050 = vpop.f32.mrb[0].mxu0
    %v1051 = vadd.f32 0.0, %v1050
    %v1052 = vpop.f32.mrb[0].mxu0
    %1053 = vmatprep.mubr.f32.mxu0 0.0
    %1054 = vmatmul.mubr.f32.gmra.mrb[0].mxu0 %v977
    %v1055 = vpop.f32.mrb[0].mxu0
    %v1056 = vadd.f32 0.0, %v1055
    %v1057 = vpop.f32.mrb[0].mxu0
    %1058 = vmatprep.mubr.f32.mxu0 0.0
    %1059 = vmatmul.mubr.f32.gmra.mrb[0].mxu0 %v978
    %v1060 = vpop.f32.mrb[0].mxu0
    %v1061 = vadd.f32 0.0, %v1060
    %v1062 = vpop.f32.mrb[0].mxu0
    %1063 = vdwg.mxu0
    %v1064 = vadd.f32 %v1046, %v1051
    %v1065 = vadd.f32 %v1064, %v1056
    %v1066 = vadd.f32 %v1065, %v1061
    %v1067 = vrot.slane %v1066, 4
    %v1068 = vadd.f32 %v1066, %v1067
    %v1069 = vrot.slane %v1068, 2
    %v1070 = vadd.f32 %v1068, %v1069
    %v1071 = vrot.slane %v1070, 1
    %v1072 = vadd.f32 %v1070, %v1071
    %v1073 = vmul.f32 %v974, 0.001953125
    %v1074 = vmul.f32 %v1072, 0.001953125
    %v1075 = vmul.f32 %v1073, %v1073
    %v1076 = vsub.f32 %v1074, %v1075
    %v1077 = vadd.f32 %v1076, 1e-05
    %v1078 = vrsqrt.pop %v1077
    %v1079 = vsub.f32 %v861, %v1073
    %v1080 = vsub.f32 %v866, %v1073
    %v1081 = vsub.f32 %v871, %v1073
    %v1082 = vsub.f32 %v876, %v1073
    %v1083 = vmul.f32 %v1078, %v879
    %v1084 = vlaneseq
    %v1085 = vshrl.u32 %v1084, 7
    %v1086 = vsub.s32 0, %v1085
    %v1087 = vrot.slane %v1083, %v1086
    %v1088 = vmul.f32 %v1079, %v1087
    %v1089 = vmul.f32 %v1080, %v1087
    %v1090 = vmul.f32 %v1081, %v1087
    %v1091 = vmul.f32 %v1082, %v1087
    %v1093 = vlaneseq
    %v1094 = vshrl.u32 %v1093, 7
    %v1095 = vsub.s32 0, %v1094
    %v1096 = vrot.slane %v880, %v1095
    %v1098 = vadd.f32 %v1088, %v1096
    %v1099 = vadd.f32 %v1089, %v1096
    %v1100 = vadd.f32 %v1090, %v1096
    %v1101 = vadd.f32 %v1091, %v1096
    %v1102 = vadd.f32 %v1098, %v162
    %v1103 = vadd.f32 %v1099, %v163
    %v1104 = vadd.f32 %v1100, %v164
    %v1105 = vadd.f32 %v1101, %v165
    %v1106 = vmax.f32 %v1102, 0.0
    %v1107 = vmax.f32 %v1103, 0.0
    %v1108 = vmax.f32 %v1104, 0.0
    %v1109 = vmax.f32 %v1105, 0.0
    %1110 = vst [vmem:[#allocation10] sm:$0xff] %v1106
    %1111 = vst [vmem:[#allocation10 + $0x8] sm:$0xff] %v1107
    %1112 = vst [vmem:[#allocation10 + $0x10] sm:$0xff] %v1108
    %1113 = vst [vmem:[#allocation10 + $0x18] sm:$0xff] %v1109
    // Predicated region
    $region50: #{tpu_custom_call.1} parent=1 // pred_check
      _
    $region51: #{tpu_custom_call.1} parent=1 // pred_check_branch
      %1115 = sbr.rel (0) target = $region53
    $region52: #{tpu_custom_call.1} parent=1 // pred_region
      %s1117 = ssub.s32 512, 512
      %1118 = vsyncadd [#allocation4], %s1117
      %s1119 = sshll.u32 [#allocation10], 4
      %s1120 = int_to_ptr.vmem [resolvable:$true] %s1119
      %1125 = dma.vmem_to_hbm [thread:$0]  %s1120, 512, %s8, [#allocation4], 128, 128, 8
    $region53: #{tpu_custom_call.1} parent=1 // pred_fallthru
      _
    // Predicated region
    $region54: #{tpu_custom_call.1} parent=1 // pred_check
      _
    $region55: #{tpu_custom_call.1} parent=1 // pred_check_branch
      %1127 = sbr.rel (0) target = $region57
    $region56: #{tpu_custom_call.1} parent=1 // pred_region
      %1128 = dma.done [#allocation4], 512
    $region57: #{tpu_custom_call.1} parent=1 // pred_fallthru
      _
    %1129 = vsyncpa [#allocation3], 1
    %1130 = vsyncpa [#allocation6], 1
    %1131 = vsyncpa [#allocation9], 1
    %1132 = vsyncpa [#allocation4], 1

</llo_original>
